<compile_context>
chip_gen: v7x
topology: tpu7x:2x2x1
jax: 0.10.0
libtpu: 0.0.40
codegen_flags: <defaults>
</compile_context>

<pallas_src>
import functools

import jax
import jax.numpy as jnp
from jax.experimental import pallas as pl
from jax.experimental.pallas import tpu as pltpu

LN_EPS = 1e-5
_LANE = 128


def _round_up(x, m):
    return -(-x // m) * m


@functools.lru_cache(maxsize=None)
def _vmem_plan():
    """(tile_budget_bytes, vmem_limit_bytes, min_grid_steps), generation-aware."""
    vmem = 64 << 20  # conservative default (v7x per-TensorCore)
    try:
        vmem = int(pltpu.get_tpu_info().vmem_capacity_bytes)
    except Exception:
        pass
    limit = max(32 << 20, min(vmem - (16 << 20), 100 << 20))   # 48 MiB on v7x, 100 MiB on v5e/v6e
    budget = limit - (8 << 20)                                  # 40 MiB on v7x, 92 MiB on v5e/v6e
    # 64 MiB/TC parts (v7x) have two TensorCores per chip -> keep >= 8 grid
    # steps to feed both; single-TC v5e/v6e only need a few steps to pipeline.
    min_steps = 8 if vmem <= (64 << 20) else 3
    return budget, limit, min_steps


def _choose_tm(M, k_pad, n_pad, x_bytes, w_bytes, align, budget, min_steps):
    """Row-tile size from a VMEM budget; prefer big, MXU-friendly tiles."""
    # Fixed cost: grid-invariant, single-buffered (Buffered(1)) weight + f32
    # param vectors.
    fixed = k_pad * n_pad * w_bytes + 4 * (2 * k_pad + 3 * n_pad)
    # Per-row cost: double-buffered in/out tiles + their f32 temporaries.
    per_row = k_pad * (2 * x_bytes + 8) + n_pad * (2 * x_bytes + 8)
    avail = budget - fixed
    if avail < per_row * align:
        cap = align          # weight nearly fills the budget; never tile K / n
    else:
        cap = (avail // per_row) // align * align
    tm = min(512, cap, _round_up(M, align))
    if tm >= 256:
        tm = (tm // 256) * 256        # fill the 256x256 MXU on v6e/v7x
    if M >= min_steps * 256:
        step_cap = _round_up(pl.cdiv(M, min_steps), 256 if tm >= 256 else align)
        tm = min(tm, step_cap)
    return max(align, tm)


def _patch_embed_kernel(x_ref, g1_ref, b1_ref, w_ref, bias_ref, g2_ref, b2_ref,
                        o_ref, *, inv_k, inv_n):
    # ---- LayerNorm over the TRUE K (padded x / g1 / b1 columns are 0) ----
    x = x_ref[...].astype(jnp.float32)                       # (tm, K_pad)
    mu = jnp.sum(x, axis=-1, keepdims=True) * inv_k
    ex2 = jnp.sum(x * x, axis=-1, keepdims=True) * inv_k
    var = ex2 - mu * mu                                       # one-pass stats
    xn = (x - mu) * jax.lax.rsqrt(var + LN_EPS)
    xn = xn * g1_ref[...] + b1_ref[...]   # zero g1/b1 pads -> padded xn cols == 0

    # ---- Linear: MXU matmul in the weight's native dtype, f32 accumulate ----
    h = jnp.dot(xn.astype(w_ref.dtype), w_ref[...],
                preferred_element_type=jnp.float32)           # (tm, n_pad)
    h = h + bias_ref[...]          # padded bias cols are 0 -> padded h cols stay 0

    # ---- LayerNorm over the TRUE dim_out (padded cols contribute 0) ----
    mu2 = jnp.sum(h, axis=-1, keepdims=True) * inv_n
    ex2b = jnp.sum(h * h, axis=-1, keepdims=True) * inv_n
    var2 = ex2b - mu2 * mu2
    hn = (h - mu2) * jax.lax.rsqrt(var2 + LN_EPS)
    hn = hn * g2_ref[...] + b2_ref[...]   # zero g2/b2 pads -> padded out cols 0

    o_ref[...] = hn.astype(o_ref.dtype)


def prepare_params(params):
    """One-time (outside the jitted call) conversion to the kernel layout.

    Pads K and dim_out to lane multiples with ZEROS (the in-kernel LayerNorms
    rely on exact-zero padding; the true divisors are carried separately).
    Returns (padded_arrays, true_K, true_dim_out).
    """
    g1, b1, w, bias, g2, b2 = params
    K, dim_out = w.shape
    k_pad = _round_up(K, _LANE)
    n_pad = _round_up(dim_out, _LANE)
    w_p = jnp.pad(w, ((0, k_pad - K), (0, n_pad - dim_out)))
    g1_p = jnp.pad(g1.astype(jnp.float32), (0, k_pad - K)).reshape(1, k_pad)
    b1_p = jnp.pad(b1.astype(jnp.float32), (0, k_pad - K)).reshape(1, k_pad)
    bias_p = jnp.pad(bias.astype(jnp.float32), (0, n_pad - dim_out)).reshape(1, n_pad)
    g2_p = jnp.pad(g2.astype(jnp.float32), (0, n_pad - dim_out)).reshape(1, n_pad)
    b2_p = jnp.pad(b2.astype(jnp.float32), (0, n_pad - dim_out)).reshape(1, n_pad)
    return (g1_p, b1_p, w_p, bias_p, g2_p, b2_p), int(K), int(dim_out)


@functools.partial(jax.jit, static_argnames=("k_true", "n_true"))
def _patch_embeddings_impl(x, g1, b1, w, bias, g2, b2, *, k_true, n_true):
    *lead, r, d = x.shape
    K = r * d
    assert K == k_true, (K, k_true)
    k_pad, n_pad = w.shape

    M = 1
    for s in lead:
        M *= s
    x_flat = x.reshape(M, K)
    if k_pad != K:
        # Lane-dense K: zero x pad columns (g1/b1 pads are zero -> xn pads 0).
        x_flat = jnp.pad(x_flat, ((0, 0), (0, k_pad - K)))

    x_bytes = x.dtype.itemsize
    w_bytes = w.dtype.itemsize
    align = 16 if x.dtype == jnp.bfloat16 else 8
    budget, vmem_limit, min_steps = _vmem_plan()
    tm = _choose_tm(M, k_pad, n_pad, x_bytes, w_bytes, align, budget, min_steps)
    grid = (pl.cdiv(M, tm),)

    kernel = functools.partial(_patch_embed_kernel,
                               inv_k=1.0 / k_true, inv_n=1.0 / n_true)

    # Grid-invariant operands: constant index_map + single-buffered.
    invariant = pl.Buffered(1)
    row_spec = pl.BlockSpec((tm, k_pad), lambda i: (i, 0))
    out_spec = pl.BlockSpec((tm, n_pad), lambda i: (i, 0))
    vecK_spec = pl.BlockSpec((1, k_pad), lambda i: (0, 0), pipeline_mode=invariant)
    vecO_spec = pl.BlockSpec((1, n_pad), lambda i: (0, 0), pipeline_mode=invariant)
    w_spec = pl.BlockSpec((k_pad, n_pad), lambda i: (0, 0), pipeline_mode=invariant)

    cost = pl.CostEstimate(
        flops=2 * M * k_pad * n_pad + 10 * M * (k_pad + n_pad),
        transcendentals=2 * M,
        bytes_accessed=(M * k_pad * x_bytes + k_pad * n_pad * w_bytes
                        + M * n_pad * x_bytes
                        + 4 * (2 * k_pad + 3 * n_pad)))

    out_flat = pl.pallas_call(
        kernel,
        out_shape=jax.ShapeDtypeStruct((M, n_pad), x.dtype),
        grid_spec=pltpu.PrefetchScalarGridSpec(
            num_scalar_prefetch=0,
            grid=grid,
            in_specs=[row_spec, vecK_spec, vecK_spec, w_spec, vecO_spec,
                      vecO_spec, vecO_spec],
            out_specs=out_spec,
        ),
        compiler_params=pltpu.CompilerParams(
            dimension_semantics=("parallel",),
            vmem_limit_bytes=vmem_limit),
        cost_estimate=cost,
    )(x_flat, g1, b1, w, bias, g2, b2)

    # Exact module semantics require (..., dim_out); the slice is an extra XLA
    # copy only when n_pad != dim_out — consumers that can handle the padded
    # slab should take out_flat directly.
    out = out_flat[:, :n_true] if n_pad != n_true else out_flat
    return out.reshape(*lead, n_true)


def patch_embeddings(x, prepared):
    """x: (..., seq_len, dim_in), prepared = prepare_params(params)."""
    arrays, k_true, n_true = prepared
    return _patch_embeddings_impl(x, *arrays, k_true=k_true, n_true=n_true)


def init_params(key, dim_in, dim_out, seq_len, dtype=jnp.float32):
    K = seq_len * dim_in
    k_w, k_b = jax.random.split(key)
    # LayerNorm affine params (torch default: weight=1, bias=0) — small
    # deterministic perturbations so the affine path is exercised.
    g1 = jnp.ones((K,), jnp.float32) + 0.01 * jnp.arange(K, dtype=jnp.float32)
    b1 = 0.001 * jnp.arange(K, dtype=jnp.float32)
    # nn.Linear weight (dim_out, K) uniform(-1/sqrt(K), 1/sqrt(K)); stored
    # transposed as (K, dim_out) for the kernel.
    lim = 1.0 / jnp.sqrt(jnp.array(K, jnp.float32))
    w = jax.random.uniform(k_w, (K, dim_out), jnp.float32, -lim, lim).astype(dtype)
    bias = jax.random.uniform(k_b, (dim_out,), jnp.float32, -lim, lim)
    g2 = jnp.ones((dim_out,), jnp.float32) - 0.005 * jnp.arange(dim_out, dtype=jnp.float32)
    b2 = 0.002 * jnp.arange(dim_out, dtype=jnp.float32)
    return (g1, b1, w, bias, g2, b2)


def _reference(x, params):
    g1, b1, w, bias, g2, b2 = params
    *lead, r, d = x.shape
    xf = x.reshape(*lead, r * d).astype(jnp.float32)

    def ln(v, g, b):
        mu = jnp.mean(v, -1, keepdims=True)
        var = jnp.mean((v - mu) ** 2, -1, keepdims=True)
        return (v - mu) * jax.lax.rsqrt(var + LN_EPS) * g + b

    h = ln(xf, g1.astype(jnp.float32), b1.astype(jnp.float32)) \
        @ w.astype(jnp.float32) + bias.astype(jnp.float32)
    return ln(h, g2.astype(jnp.float32), b2.astype(jnp.float32)).astype(x.dtype)


if __name__ == "__main__":
    key = jax.random.PRNGKey(0)
    k_x, k_p, k_r = jax.random.split(key, 3)

    # Small shapes consistent with the module: (batch, num_patches, seq_len, dim_in)
    batch, num_patches, seq_len, dim_in, dim_out = 2, 8, 4, 8, 32
    x = jax.random.normal(k_x, (batch, num_patches, seq_len, dim_in),
                          jnp.float32)
    params = init_params(k_p, dim_in, dim_out, seq_len)
    prepared = prepare_params(params)

    # f32 path
    out = jax.block_until_ready(patch_embeddings(x, prepared))
    ref = _reference(x, params)
    assert out.shape == (batch, num_patches, dim_out), out.shape
    assert jnp.allclose(out, ref, atol=1e-4, rtol=1e-4), \
        float(jnp.max(jnp.abs(out - ref)))

    # Ragged-M path: leading-dim product (21) is not a multiple of the row tile.
    x_rag = jax.random.normal(k_r, (3, 7, seq_len, dim_in), jnp.float32)
    out_rag = jax.block_until_ready(patch_embeddings(x_rag, prepared))
    ref_rag = _reference(x_rag, params)
    assert out_rag.shape == (3, 7, dim_out), out_rag.shape
    assert jnp.allclose(out_rag, ref_rag, atol=1e-4, rtol=1e-4), \
        float(jnp.max(jnp.abs(out_rag - ref_rag)))

    # bf16 path (native-dtype MXU operands, f32 accumulation) — loose tolerance.
    x_bf = x.astype(jnp.bfloat16)
    g1, b1, w, bias, g2, b2 = params
    params_bf = (g1, b1, w.astype(jnp.bfloat16), bias, g2, b2)
    prepared_bf = prepare_params(params_bf)
    out_bf = jax.block_until_ready(patch_embeddings(x_bf, prepared_bf))
    ref_bf = _reference(x_bf, params)   # f32 reference math on bf16 inputs
    assert out_bf.shape == (batch, num_patches, dim_out), out_bf.shape
    assert jnp.allclose(out_bf.astype(jnp.float32),
                        ref_bf.astype(jnp.float32), atol=1e-1, rtol=1e-1), \
        float(jnp.max(jnp.abs(out_bf.astype(jnp.float32) -
                              ref_bf.astype(jnp.float32))))

    print("KERNEL_OK")
</pallas_src>

<mosaic_0001>
module attributes {stable_mosaic.version = 11 : i64} {
  func.func @_patch_embed_kernel(%arg0: i32, %arg1: memref<16x128xf32, #tpu.memory_space<vmem>>, %arg2: memref<1x128xf32, #tpu.memory_space<vmem>>, %arg3: memref<1x128xf32, #tpu.memory_space<vmem>>, %arg4: memref<128x128xf32, #tpu.memory_space<vmem>>, %arg5: memref<1x128xf32, #tpu.memory_space<vmem>>, %arg6: memref<1x128xf32, #tpu.memory_space<vmem>>, %arg7: memref<1x128xf32, #tpu.memory_space<vmem>>, %arg8: memref<16x128xf32, #tpu.memory_space<vmem>>) attributes {dimension_semantics = [#tpu.dimension_semantics<parallel>], iteration_bounds = array<i64: 1>, scalar_prefetch = 0 : i64, scratch_operands = 0 : i64, tpu.core_type = #tpu.core_type<tc>, window_params = [{transform_indices = @transform_0, window_bounds = array<i64: 16, 128>}, {pipeline_mode = #tpu.pipeline_mode<synchronous>, transform_indices = @transform_1, window_bounds = array<i64: 1, 128>}, {pipeline_mode = #tpu.pipeline_mode<synchronous>, transform_indices = @transform_2, window_bounds = array<i64: 1, 128>}, {pipeline_mode = #tpu.pipeline_mode<synchronous>, transform_indices = @transform_3, window_bounds = array<i64: 128, 128>}, {pipeline_mode = #tpu.pipeline_mode<synchronous>, transform_indices = @transform_4, window_bounds = array<i64: 1, 128>}, {pipeline_mode = #tpu.pipeline_mode<synchronous>, transform_indices = @transform_5, window_bounds = array<i64: 1, 128>}, {pipeline_mode = #tpu.pipeline_mode<synchronous>, transform_indices = @transform_6, window_bounds = array<i64: 1, 128>}, {transform_indices = @transform_7, window_bounds = array<i64: 16, 128>}]} {
    %c0 = arith.constant 0 : index
    %c0_0 = arith.constant 0 : index
    %0 = vector.load %arg1[%c0, %c0_0] : memref<16x128xf32, #tpu.memory_space<vmem>>, vector<16x128xf32>
    %cst = arith.constant dense<0.000000e+00> : vector<16xf32>
    %1 = vector.multi_reduction <add>, %0, %cst [1] : vector<16x128xf32> to vector<16xf32>
    %2 = vector.shape_cast %1 : vector<16xf32> to vector<16x1xf32>
    %cst_1 = arith.constant 3.125000e-02 : f32
    %3 = vector.broadcast %cst_1 : f32 to vector<16x1xf32>
    %4 = arith.mulf %2, %3 : vector<16x1xf32>
    %5 = arith.mulf %0, %0 : vector<16x128xf32>
    %cst_2 = arith.constant dense<0.000000e+00> : vector<16xf32>
    %6 = vector.multi_reduction <add>, %5, %cst_2 [1] : vector<16x128xf32> to vector<16xf32>
    %7 = vector.shape_cast %6 : vector<16xf32> to vector<16x1xf32>
    %cst_3 = arith.constant 3.125000e-02 : f32
    %8 = vector.broadcast %cst_3 : f32 to vector<16x1xf32>
    %9 = arith.mulf %7, %8 : vector<16x1xf32>
    %10 = arith.mulf %4, %4 : vector<16x1xf32>
    %11 = arith.subf %9, %10 : vector<16x1xf32>
    %12 = vector.broadcast %4 : vector<16x1xf32> to vector<16x128xf32>
    %13 = arith.subf %0, %12 : vector<16x128xf32>
    %cst_4 = arith.constant 9.99999974E-6 : f32
    %14 = vector.broadcast %cst_4 : f32 to vector<16x1xf32>
    %15 = arith.addf %11, %14 : vector<16x1xf32>
    %16 = math.rsqrt %15 : vector<16x1xf32>
    %17 = vector.broadcast %16 : vector<16x1xf32> to vector<16x128xf32>
    %18 = arith.mulf %13, %17 : vector<16x128xf32>
    %c0_5 = arith.constant 0 : index
    %c0_6 = arith.constant 0 : index
    %19 = vector.load %arg2[%c0_5, %c0_6] : memref<1x128xf32, #tpu.memory_space<vmem>>, vector<1x128xf32>
    %20 = vector.broadcast %19 : vector<1x128xf32> to vector<16x128xf32>
    %21 = arith.mulf %18, %20 : vector<16x128xf32>
    %c0_7 = arith.constant 0 : index
    %c0_8 = arith.constant 0 : index
    %22 = vector.load %arg3[%c0_7, %c0_8] : memref<1x128xf32, #tpu.memory_space<vmem>>, vector<1x128xf32>
    %23 = vector.broadcast %22 : vector<1x128xf32> to vector<16x128xf32>
    %24 = arith.addf %21, %23 : vector<16x128xf32>
    %c0_9 = arith.constant 0 : index
    %c0_10 = arith.constant 0 : index
    %25 = vector.load %arg4[%c0_9, %c0_10] : memref<128x128xf32, #tpu.memory_space<vmem>>, vector<128x128xf32>
    %cst_11 = arith.constant dense<0.000000e+00> : vector<16x128xf32>
    %26 = tpu.matmul %24, %25, %cst_11 {dimension_numbers = #tpu.dot_dimension_numbers<[1], [0], [0], [1], [0, 0, 1, 1], [], []>} : vector<16x128xf32>, vector<128x128xf32>, vector<16x128xf32> -> vector<16x128xf32>
    %c0_12 = arith.constant 0 : index
    %c0_13 = arith.constant 0 : index
    %27 = vector.load %arg5[%c0_12, %c0_13] : memref<1x128xf32, #tpu.memory_space<vmem>>, vector<1x128xf32>
    %28 = vector.broadcast %27 : vector<1x128xf32> to vector<16x128xf32>
    %29 = arith.addf %26, %28 : vector<16x128xf32>
    %cst_14 = arith.constant dense<0.000000e+00> : vector<16xf32>
    %30 = vector.multi_reduction <add>, %29, %cst_14 [1] : vector<16x128xf32> to vector<16xf32>
    %31 = vector.shape_cast %30 : vector<16xf32> to vector<16x1xf32>
    %cst_15 = arith.constant 3.125000e-02 : f32
    %32 = vector.broadcast %cst_15 : f32 to vector<16x1xf32>
    %33 = arith.mulf %31, %32 : vector<16x1xf32>
    %34 = arith.mulf %29, %29 : vector<16x128xf32>
    %cst_16 = arith.constant dense<0.000000e+00> : vector<16xf32>
    %35 = vector.multi_reduction <add>, %34, %cst_16 [1] : vector<16x128xf32> to vector<16xf32>
    %36 = vector.shape_cast %35 : vector<16xf32> to vector<16x1xf32>
    %cst_17 = arith.constant 3.125000e-02 : f32
    %37 = vector.broadcast %cst_17 : f32 to vector<16x1xf32>
    %38 = arith.mulf %36, %37 : vector<16x1xf32>
    %39 = arith.mulf %33, %33 : vector<16x1xf32>
    %40 = arith.subf %38, %39 : vector<16x1xf32>
    %41 = vector.broadcast %33 : vector<16x1xf32> to vector<16x128xf32>
    %42 = arith.subf %29, %41 : vector<16x128xf32>
    %cst_18 = arith.constant 9.99999974E-6 : f32
    %43 = vector.broadcast %cst_18 : f32 to vector<16x1xf32>
    %44 = arith.addf %40, %43 : vector<16x1xf32>
    %45 = math.rsqrt %44 : vector<16x1xf32>
    %46 = vector.broadcast %45 : vector<16x1xf32> to vector<16x128xf32>
    %47 = arith.mulf %42, %46 : vector<16x128xf32>
    %c0_19 = arith.constant 0 : index
    %c0_20 = arith.constant 0 : index
    %48 = vector.load %arg6[%c0_19, %c0_20] : memref<1x128xf32, #tpu.memory_space<vmem>>, vector<1x128xf32>
    %49 = vector.broadcast %48 : vector<1x128xf32> to vector<16x128xf32>
    %50 = arith.mulf %47, %49 : vector<16x128xf32>
    %c0_21 = arith.constant 0 : index
    %c0_22 = arith.constant 0 : index
    %51 = vector.load %arg7[%c0_21, %c0_22] : memref<1x128xf32, #tpu.memory_space<vmem>>, vector<1x128xf32>
    %52 = vector.broadcast %51 : vector<1x128xf32> to vector<16x128xf32>
    %53 = arith.addf %50, %52 : vector<16x128xf32>
    %c0_23 = arith.constant 0 : index
    %c0_24 = arith.constant 0 : index
    %54 = vector.load %arg8[%c0_23, %c0_24] : memref<16x128xf32, #tpu.memory_space<vmem>>, vector<16x128xf32>
    tpu.vector_store %arg8[%c0_23, %c0_24], %53 {strides = array<i32>} : memref<16x128xf32, #tpu.memory_space<vmem>>, vector<16x128xf32>,
    return
  }
  func.func @transform_0(%arg0: i32) -> (i32, i32) {
    %c0_i32 = arith.constant 0 : i32
    %c0_i32_0 = arith.constant 0 : i32
    return %arg0, %c0_i32 : i32, i32
  }
  func.func @transform_1(%arg0: i32) -> (i32, i32) {
    %c0_i32 = arith.constant 0 : i32
    %c0_i32_0 = arith.constant 0 : i32
    %c0_i32_1 = arith.constant 0 : i32
    return %c0_i32, %c0_i32_0 : i32, i32
  }
  func.func @transform_2(%arg0: i32) -> (i32, i32) {
    %c0_i32 = arith.constant 0 : i32
    %c0_i32_0 = arith.constant 0 : i32
    %c0_i32_1 = arith.constant 0 : i32
    return %c0_i32, %c0_i32_0 : i32, i32
  }
  func.func @transform_3(%arg0: i32) -> (i32, i32) {
    %c0_i32 = arith.constant 0 : i32
    %c0_i32_0 = arith.constant 0 : i32
    %c0_i32_1 = arith.constant 0 : i32
    return %c0_i32, %c0_i32_0 : i32, i32
  }
  func.func @transform_4(%arg0: i32) -> (i32, i32) {
    %c0_i32 = arith.constant 0 : i32
    %c0_i32_0 = arith.constant 0 : i32
    %c0_i32_1 = arith.constant 0 : i32
    return %c0_i32, %c0_i32_0 : i32, i32
  }
  func.func @transform_5(%arg0: i32) -> (i32, i32) {
    %c0_i32 = arith.constant 0 : i32
    %c0_i32_0 = arith.constant 0 : i32
    %c0_i32_1 = arith.constant 0 : i32
    return %c0_i32, %c0_i32_0 : i32, i32
  }
  func.func @transform_6(%arg0: i32) -> (i32, i32) {
    %c0_i32 = arith.constant 0 : i32
    %c0_i32_0 = arith.constant 0 : i32
    %c0_i32_1 = arith.constant 0 : i32
    return %c0_i32, %c0_i32_0 : i32, i32
  }
  func.func @transform_7(%arg0: i32) -> (i32, i32) {
    %c0_i32 = arith.constant 0 : i32
    %c0_i32_0 = arith.constant 0 : i32
    return %arg0, %c0_i32 : i32, i32
  }
}

</mosaic_0001>

<llo_original>
// kernel: _patch_embeddings_impl.1
$region0: #{_patch_embeddings_impl.1}
  #allocation0 [shape = 'u32[]', space=smem, size = 0x4, offset = 0x4, fixed_abs, tag = 'smem constant byte address 0x4 - core index']
  #allocation1 [shape = 'u32[144,128]{1,0:T(1,128)}', space=vmem, size = 0x12000, scoped, tag = 'internal scratch']
  %s0 = inlined_call_operand.vmem [shape: f32[16,128], index: 0, kind: input, shape index: {}]
  %s1 = inlined_call_operand.vmem [shape: f32[1,128], index: 1, kind: input, shape index: {}]
  %s2 = inlined_call_operand.vmem [shape: f32[1,128], index: 2, kind: input, shape index: {}]
  %s3 = inlined_call_operand.hbm [shape: f32[128,128], index: 3, kind: input, shape index: {}]
  %s4 = inlined_call_operand.vmem [shape: f32[1,128], index: 4, kind: input, shape index: {}]
  %s5 = inlined_call_operand.vmem [shape: f32[1,128], index: 5, kind: input, shape index: {}]
  %s6 = inlined_call_operand.vmem [shape: f32[1,128], index: 6, kind: input, shape index: {}]
  %s7 = inlined_call_operand.vmem [shape: f32[16,128], index: 7, kind: output, shape index: {}]
  %s8 = sld [smem:[#allocation0]]
  $region42: #{_patch_embeddings_impl.1} parent=0
    _
  %s10 = ssub.s32 1, %s8
  %s11 = scalar_select 0, %s10, %s8
  $region1: #{_patch_embeddings_impl.1} parent=0
    #allocation2 [shape = 'u8[65536]{0}', space=vmem, size = 0x10000, scoped, tag = 'input window, operand 3, single buffered']
    #allocation3 [shape = 's32[1]{0}', space=sflag, size = 0x4, scoped, tag = 'scoped memory for _patch_embeddings_impl.1']
    %12 = vsyncpa [#allocation3], 0
    // Predicated region
    $region2: #{_patch_embeddings_impl.1} parent=1 // pred_check
      _
    $region3: #{_patch_embeddings_impl.1} parent=1 // pred_check_branch
      %14 = sbr.rel (0) target = $region5
    $region4: #{_patch_embeddings_impl.1} parent=1 // pred_region
      _
    $region5: #{_patch_embeddings_impl.1} parent=1 // pred_fallthru
      _
    // Predicated region
    $region6: #{_patch_embeddings_impl.1} parent=1 // pred_check
      _
    $region7: #{_patch_embeddings_impl.1} parent=1 // pred_check_branch
      %16 = sbr.rel (0) target = $region9
    $region8: #{_patch_embeddings_impl.1} parent=1 // pred_region
      _
    $region9: #{_patch_embeddings_impl.1} parent=1 // pred_fallthru
      _
    // Predicated region
    $region10: #{_patch_embeddings_impl.1} parent=1 // pred_check
      _
    $region11: #{_patch_embeddings_impl.1} parent=1 // pred_check_branch
      %18 = sbr.rel (0) target = $region13
    $region12: #{_patch_embeddings_impl.1} parent=1 // pred_region
      _
    $region13: #{_patch_embeddings_impl.1} parent=1 // pred_fallthru
      _
    // Predicated region
    $region14: #{_patch_embeddings_impl.1} parent=1 // pred_check
      _
    $region15: #{_patch_embeddings_impl.1} parent=1 // pred_check_branch
      %20 = sbr.rel (0) target = $region17
    $region16: #{_patch_embeddings_impl.1} parent=1 // pred_region
      %s22 = ssub.s32 2048, 2048
      %23 = vsyncadd [#allocation3], %s22
      %s24 = sshll.u32 [#allocation2], 4
      %s25 = int_to_ptr.vmem [resolvable:$true] %s24
      %30 = dma.hbm_to_vmem [thread:$0]  %s3, 2048, %s25, [#allocation3], 128, 128, 8
    $region17: #{_patch_embeddings_impl.1} parent=1 // pred_fallthru
      _
    // Predicated region
    $region18: #{_patch_embeddings_impl.1} parent=1 // pred_check
      _
    $region19: #{_patch_embeddings_impl.1} parent=1 // pred_check_branch
      %32 = sbr.rel (0) target = $region21
    $region20: #{_patch_embeddings_impl.1} parent=1 // pred_region
      _
    $region21: #{_patch_embeddings_impl.1} parent=1 // pred_fallthru
      _
    // Predicated region
    $region22: #{_patch_embeddings_impl.1} parent=1 // pred_check
      _
    $region23: #{_patch_embeddings_impl.1} parent=1 // pred_check_branch
      %34 = sbr.rel (0) target = $region25
    $region24: #{_patch_embeddings_impl.1} parent=1 // pred_region
      _
    $region25: #{_patch_embeddings_impl.1} parent=1 // pred_fallthru
      _
    // Predicated region
    $region26: #{_patch_embeddings_impl.1} parent=1 // pred_check
      _
    $region27: #{_patch_embeddings_impl.1} parent=1 // pred_check_branch
      %36 = sbr.rel (0) target = $region29
    $region28: #{_patch_embeddings_impl.1} parent=1 // pred_region
      _
    $region29: #{_patch_embeddings_impl.1} parent=1 // pred_fallthru
      _
    // Predicated region
    $region30: #{_patch_embeddings_impl.1} parent=1 // pred_check
      _
    $region31: #{_patch_embeddings_impl.1} parent=1 // pred_check_branch
      %38 = sbr.rel (0) target = $region33
    $region32: #{_patch_embeddings_impl.1} parent=1 // pred_region
      %39 = dma.done [#allocation3], 2048
    $region33: #{_patch_embeddings_impl.1} parent=1 // pred_fallthru
      _
    %v40 = vld [vmem:[%s0] sm:$0xff]
    %v41 = vld [vmem:[%s0 + $0x8] sm:$0xff]
    %42 = vadd.xlane.f32.xlu0 %v40
    %v43 = vpop.xlane.xlu0 %42
    %44 = vadd.xlane.f32.xlu0 %v41
    %v45 = vpop.xlane.xlu0 %44
    %v46 = vmul.f32 %v43, 0.03125
    %v47 = vmul.f32 %v45, 0.03125
    %v48 = vmul.f32 %v40, %v40
    %v49 = vmul.f32 %v41, %v41
    %50 = vadd.xlane.f32.xlu0 %v48
    %v51 = vpop.xlane.xlu0 %50
    %52 = vadd.xlane.f32.xlu0 %v49
    %v53 = vpop.xlane.xlu0 %52
    %v54 = vmul.f32 %v51, 0.03125
    %v55 = vmul.f32 %v53, 0.03125
    %v56 = vmul.f32 %v46, %v46
    %v57 = vmul.f32 %v47, %v47
    %v58 = vsub.f32 %v54, %v56
    %v59 = vsub.f32 %v55, %v57
    %v60 = vsub.f32 %v40, %v46
    %v61 = vsub.f32 %v41, %v47
    %v62 = vadd.f32 %v58, 1e-05
    %v63 = vadd.f32 %v59, 1e-05
    %v64 = vrsqrt.pop %v62
    %v65 = vrsqrt.pop %v63
    %v66 = vmul.f32 %v60, %v64
    %v67 = vmul.f32 %v61, %v65
    %v68 = vld [vmem:[%s1] sm:$0x1]
    %v70 = vlaneseq
    %v71 = vshrl.u32 %v70, 7
    %v72 = vsub.s32 0, %v71
    %v73 = vrot.slane %v68, %v72
    %v75 = vmul.f32 %v66, %v73
    %v76 = vmul.f32 %v67, %v73
    %v77 = vld [vmem:[%s2] sm:$0x1]
    %v79 = vlaneseq
    %v80 = vshrl.u32 %v79, 7
    %v81 = vsub.s32 0, %v80
    %v82 = vrot.slane %v77, %v81
    %v84 = vadd.f32 %v75, %v82
    %v85 = vadd.f32 %v76, %v82
    %v86 = vld [vmem:[#allocation2] sm:$0xff]
    %v87 = vld [vmem:[#allocation2 + $0x8] sm:$0xff]
    %v88 = vld [vmem:[#allocation2 + $0x10] sm:$0xff]
    %v89 = vld [vmem:[#allocation2 + $0x18] sm:$0xff]
    %v90 = vld [vmem:[#allocation2 + $0x20] sm:$0xff]
    %v91 = vld [vmem:[#allocation2 + $0x28] sm:$0xff]
    %v92 = vld [vmem:[#allocation2 + $0x30] sm:$0xff]
    %v93 = vld [vmem:[#allocation2 + $0x38] sm:$0xff]
    %v94 = vld [vmem:[#allocation2 + $0x40] sm:$0xff]
    %v95 = vld [vmem:[#allocation2 + $0x48] sm:$0xff]
    %v96 = vld [vmem:[#allocation2 + $0x50] sm:$0xff]
    %v97 = vld [vmem:[#allocation2 + $0x58] sm:$0xff]
    %v98 = vld [vmem:[#allocation2 + $0x60] sm:$0xff]
    %v99 = vld [vmem:[#allocation2 + $0x68] sm:$0xff]
    %v100 = vld [vmem:[#allocation2 + $0x70] sm:$0xff]
    %v101 = vld [vmem:[#allocation2 + $0x78] sm:$0xff]
    %v102 = vld [vmem:[%s4] sm:$0x1]
    %v104 = vlaneseq
    %v105 = vshrl.u32 %v104, 7
    %v106 = vsub.s32 0, %v105
    %v107 = vrot.slane %v102, %v106
    %109 = vmatprep.subr.mxu0 0.0
    %110 = vmatpush1.msra.mxu0 %v86
    %111 = vmatprep.subr.mxu0 0.0
    %112 = vmatpush1.msra.mxu0 %v87
    %113 = vmatprep.subr.mxu0 0.0
    %114 = vmatpush1.msra.mxu0 %v88
    %115 = vmatprep.subr.mxu0 0.0
    %116 = vmatpush1.msra.mxu0 %v89
    %117 = vmatprep.subr.mxu0 0.0
    %118 = vmatpush1.msra.mxu0 %v90
    %119 = vmatprep.subr.mxu0 0.0
    %120 = vmatpush1.msra.mxu0 %v91
    %121 = vmatprep.subr.mxu0 0.0
    %122 = vmatpush1.msra.mxu0 %v92
    %123 = vmatprep.subr.mxu0 0.0
    %124 = vmatpush1.msra.mxu0 %v93
    %125 = vmatprep.subr.mxu0 0.0
    %126 = vmatpush1.msra.mxu0 %v94
    %127 = vmatprep.subr.mxu0 0.0
    %128 = vmatpush1.msra.mxu0 %v95
    %129 = vmatprep.subr.mxu0 0.0
    %130 = vmatpush1.msra.mxu0 %v96
    %131 = vmatprep.subr.mxu0 0.0
    %132 = vmatpush1.msra.mxu0 %v97
    %133 = vmatprep.subr.mxu0 0.0
    %134 = vmatpush1.msra.mxu0 %v98
    %135 = vmatprep.subr.mxu0 0.0
    %136 = vmatpush1.msra.mxu0 %v99
    %137 = vmatprep.subr.mxu0 0.0
    %138 = vmatpush1.msra.mxu0 %v100
    %139 = vmatprep.subr.mxu0 0.0
    %140 = vmatpush1.msra.mxu0 %v101
    %141 = vmatprep.subr.mxu0 0.0
    %142 = vmatpush1.msra.mxu0 0.0
    %143 = vmatprep.subr.mxu0 0.0
    %144 = vmatpush1.msra.mxu0 0.0
    %145 = vmatprep.subr.mxu0 0.0
    %146 = vmatpush1.msra.mxu0 0.0
    %147 = vmatprep.subr.mxu0 0.0
    %148 = vmatpush1.msra.mxu0 0.0
    %149 = vmatprep.subr.mxu0 0.0
    %150 = vmatpush1.msra.mxu0 0.0
    %151 = vmatprep.subr.mxu0 0.0
    %152 = vmatpush1.msra.mxu0 0.0
    %153 = vmatprep.subr.mxu0 0.0
    %154 = vmatpush1.msra.mxu0 0.0
    %155 = vmatprep.subr.mxu0 0.0
    %156 = vmatpush1.msra.mxu0 0.0
    %157 = vmatprep.subr.mxu0 0.0
    %158 = vmatpush1.msra.mxu0 0.0
    %159 = vmatprep.subr.mxu0 0.0
    %160 = vmatpush1.msra.mxu0 0.0
    %161 = vmatprep.subr.mxu0 0.0
    %162 = vmatpush1.msra.mxu0 0.0
    %163 = vmatprep.subr.mxu0 0.0
    %164 = vmatpush1.msra.mxu0 0.0
    %165 = vmatprep.subr.mxu0 0.0
    %166 = vmatpush1.msra.mxu0 0.0
    %167 = vmatprep.subr.mxu0 0.0
    %168 = vmatpush1.msra.mxu0 0.0
    %169 = vmatprep.subr.mxu0 0.0
    %170 = vmatpush1.msra.mxu0 0.0
    %171 = vmatprep.subr.mxu0 0.0
    %172 = vmatpush1.msra.mxu0 0.0
    %173 = vmatprep.mubr.f32.mxu0 0.0
    %174 = vmatmul.mubr.f32.gmra.mrb[0].mxu0 %v84
    %v175 = vpop.f32.mrb[0].mxu0
    %v176 = vadd.f32 %v107, %v175
    %v177 = vpop.f32.mrb[0].mxu0
    %178 = vmatprep.mubr.f32.mxu0 0.0
    %179 = vmatmul.mubr.f32.gmra.mrb[0].mxu0 %v85
    %v180 = vpop.f32.mrb[0].mxu0
    %v181 = vadd.f32 %v107, %v180
    %v182 = vpop.f32.mrb[0].mxu0
    %183 = vdwg.mxu0
    %184 = vadd.xlane.f32.xlu0 %v176
    %v185 = vpop.xlane.xlu0 %184
    %186 = vadd.xlane.f32.xlu0 %v181
    %v187 = vpop.xlane.xlu0 %186
    %v188 = vmul.f32 %v185, 0.03125
    %v189 = vmul.f32 %v187, 0.03125
    %v190 = vmul.f32 %v176, %v176
    %v191 = vmul.f32 %v181, %v181
    %192 = vadd.xlane.f32.xlu0 %v190
    %v193 = vpop.xlane.xlu0 %192
    %194 = vadd.xlane.f32.xlu0 %v191
    %v195 = vpop.xlane.xlu0 %194
    %v196 = vmul.f32 %v193, 0.03125
    %v197 = vmul.f32 %v195, 0.03125
    %v198 = vmul.f32 %v188, %v188
    %v199 = vmul.f32 %v189, %v189
    %v200 = vsub.f32 %v196, %v198
    %v201 = vsub.f32 %v197, %v199
    %v202 = vsub.f32 %v176, %v188
    %v203 = vsub.f32 %v181, %v189
    %v204 = vadd.f32 %v200, 1e-05
    %v205 = vadd.f32 %v201, 1e-05
    %v206 = vrsqrt.pop %v204
    %v207 = vrsqrt.pop %v205
    %v208 = vmul.f32 %v202, %v206
    %v209 = vmul.f32 %v203, %v207
    %v210 = vld [vmem:[%s5] sm:$0x1]
    %v212 = vlaneseq
    %v213 = vshrl.u32 %v212, 7
    %v214 = vsub.s32 0, %v213
    %v215 = vrot.slane %v210, %v214
    %v217 = vmul.f32 %v208, %v215
    %v218 = vmul.f32 %v209, %v215
    %v219 = vld [vmem:[%s6] sm:$0x1]
    %v221 = vlaneseq
    %v222 = vshrl.u32 %v221, 7
    %v223 = vsub.s32 0, %v222
    %v224 = vrot.slane %v219, %v223
    %v226 = vadd.f32 %v217, %v224
    %v227 = vadd.f32 %v218, %v224
    %228 = vst [vmem:[%s7] sm:$0xff] %v226
    %229 = vst [vmem:[%s7 + $0x8] sm:$0xff] %v227
    // Predicated region
    $region34: #{_patch_embeddings_impl.1} parent=1 // pred_check
      _
    $region35: #{_patch_embeddings_impl.1} parent=1 // pred_check_branch
      %231 = sbr.rel (0) target = $region37
    $region36: #{_patch_embeddings_impl.1} parent=1 // pred_region
      _
    $region37: #{_patch_embeddings_impl.1} parent=1 // pred_fallthru
      _
    // Predicated region
    $region38: #{_patch_embeddings_impl.1} parent=1 // pred_check
      _
    $region39: #{_patch_embeddings_impl.1} parent=1 // pred_check_branch
      %233 = sbr.rel (0) target = $region41
    $region40: #{_patch_embeddings_impl.1} parent=1 // pred_region
      _
    $region41: #{_patch_embeddings_impl.1} parent=1 // pred_fallthru
      _
    %234 = vsyncpa [#allocation3], 1

</llo_original>
